<compile_context>
chip_gen: v7x
topology: tpu7x:2x2x1
jax: 0.10.0
libtpu: 0.0.40
codegen_flags: <defaults>
</compile_context>

<pallas_src>
import jax
import jax.numpy as jnp
from jax.experimental import pallas as pl
from jax.experimental.pallas import tpu as pltpu

EPS = 1e-5
LANE = 128
SUBLANE = 8


def _round_up(n, m):
    return ((n + m - 1) // m) * m


# ----------------------------- kernels --------------------------------------

def dan_flat_kernel(x_ref, w_ref, b_ref, o_ref):
    # x_ref: (tb, S*D) lane-dense; w_ref: (S*D, Rp) = tile(Wc/S, S); b_ref: (1, Rp)
    o_ref[...] = (
        jnp.dot(x_ref[...], w_ref[...], preferred_element_type=jnp.float32)
        + b_ref[...]
    )


def dan_sum_kernel(x_ref, w_ref, b_ref, o_ref):
    # Fallback when tiling Wc S-fold is too large: XLU sum over S, then one dot.
    s = jnp.sum(x_ref[...], axis=1)                                   # (tb, D)
    o_ref[...] = (
        jnp.dot(s, w_ref[...], preferred_element_type=jnp.float32) + b_ref[...]
    )


# ----------------------------- host-side folding ----------------------------

def _fold_params(params):
    """Collapse mean scale (added later), eval BN1/BN2 and both linears.

    Returns Wc (D, R), bc (1, R) with  DAN(x) == x.mean(1) @ Wc + bc.
    """
    scale1 = params["g1"] * jax.lax.rsqrt(params["v1"] + EPS)        # (1, D)
    shift1 = params["b1"] - params["m1"] * scale1                     # (1, D)
    scale2 = params["g2"] * jax.lax.rsqrt(params["v2"] + EPS)        # (1, H)
    shift2 = params["b2"] - params["m2"] * scale2                     # (1, H)

    w1s = params["w1"] * scale1.reshape(-1, 1)                        # (D, H)
    wc = (w1s * scale2) @ params["w2"]                                # (D, R)
    bc = (
        ((shift1 @ params["w1"] + params["bias1"]) * scale2 + shift2)
        @ params["w2"]
        + params["bias2"]
    )                                                                  # (1, R)
    return wc, bc


# ----------------------------- wrapper ---------------------------------------

def dan_forward(x, params, *, use_bf16=False):
    B, S, D = x.shape
    R = params["w2"].shape[1]

    wc, bc = _fold_params(params)
    Rp = _round_up(R, LANE)
    bcp = jnp.zeros((1, Rp), jnp.float32).at[:, :R].set(bc)

    compute_dtype = jnp.bfloat16 if use_bf16 else jnp.float32
    itemsize = 2 if use_bf16 else 4

    sd = S * D
    sd_lane = _round_up(sd, LANE)

    # ---- choose kernel path -------------------------------------------------
    # Fast path: x flattened to (B, S*D); weight = tile(Wc/S, S) -> (S*D, Rp).
    # Only if the (double-buffered) tiled weight stays well inside VMEM.
    w_flat_bytes = 2 * _round_up(sd, SUBLANE) * Rp * itemsize
    flat_ok = w_flat_bytes <= 16 * 1024 * 1024

    if flat_ok:
        kernel = dan_flat_kernel
        w_host = jnp.tile(wc / float(S), (S, 1))                      # (S*D, R)
        wp = (
            jnp.zeros((sd, Rp), jnp.float32).at[:, :R].set(w_host).astype(compute_dtype)
        )
        xk = x.reshape(B, sd).astype(compute_dtype)
        x_row_bytes = sd_lane * itemsize                              # per batch row in VMEM
        weight_bytes = w_flat_bytes
        x_block = lambda tb: pl.BlockSpec((tb, sd), lambda i: (i, 0))
        w_spec = pl.BlockSpec((sd, Rp), lambda i: (0, 0))
        flops = 2 * B * sd * Rp
        bytes_acc = B * sd * itemsize + sd * Rp * itemsize + Rp * 4 + B * Rp * 4
    else:
        kernel = dan_sum_kernel
        wp = (
            jnp.zeros((D, Rp), jnp.float32)
            .at[:, :R]
            .set(wc / float(S))
            .astype(compute_dtype)
        )
        xk = x.astype(compute_dtype)
        x_row_bytes = _round_up(S, SUBLANE) * _round_up(D, LANE) * itemsize
        weight_bytes = 2 * _round_up(D, SUBLANE) * Rp * itemsize
        x_block = lambda tb: pl.BlockSpec((tb, S, D), lambda i: (i, 0, 0))
        w_spec = pl.BlockSpec((D, Rp), lambda i: (0, 0))
        flops = 2 * B * D * Rp + B * S * D
        bytes_acc = B * S * D * itemsize + D * Rp * itemsize + Rp * 4 + B * Rp * 4

    # ---- batch tiling: clamp to the real batch, real padded VMEM footprint --
    B8 = _round_up(B, SUBLANE)
    budget = 40 * 1024 * 1024            # total residency budget (safe on v7x 64 MiB)
    vmem_limit = 48 * 1024 * 1024
    out_row_bytes = 2 * Rp * 4                                        # double-buffered out
    per_row = 2 * x_row_bytes + out_row_bytes                         # double-buffered x
    avail = max(budget - weight_bytes - 2 * Rp * 4, per_row * SUBLANE)
    tb_vmem = max(SUBLANE, (avail // per_row) // SUBLANE * SUBLANE)
    tb = max(SUBLANE, min(B8, 512, tb_vmem))
    if B8 >= 2 * SUBLANE:
        # Make sure there are >= 2 grid steps so v7x megacore has work for
        # both TensorCores (one extra ~0.35us step is noise on v5e/v6e).
        tb = min(tb, _round_up(pl.cdiv(B8, 2), SUBLANE))
    n_tiles = pl.cdiv(B, tb)             # ragged last block; OOB writes are masked

    cost = pl.CostEstimate(flops=flops, transcendentals=0, bytes_accessed=bytes_acc)

    out = pl.pallas_call(
        kernel,
        out_shape=jax.ShapeDtypeStruct((B, Rp), jnp.float32),
        grid=(n_tiles,),
        in_specs=[
            x_block(tb),                                   # x: tiled over batch
            w_spec,                                        # folded weight, resident
            pl.BlockSpec((1, Rp), lambda i: (0, 0)),       # folded bias, resident
        ],
        out_specs=pl.BlockSpec((tb, Rp), lambda i: (i, 0)),
        compiler_params=pltpu.CompilerParams(
            dimension_semantics=("parallel",),             # megacore on v7x
            vmem_limit_bytes=vmem_limit,
        ),
        cost_estimate=cost,
    )(xk, wp, bcp)

    return out[:, :R]


# ----------------------------- params / reference ----------------------------

def init_params(key, input_dim, hidden, r):
    ks = jax.random.split(key, 8)
    # PyTorch Linear default init: U(-1/sqrt(fan_in), 1/sqrt(fan_in)).
    lim1 = 1.0 / jnp.sqrt(input_dim)
    lim2 = 1.0 / jnp.sqrt(hidden)
    return {
        # BatchNorm1d(input_dim), perturbed so the BN path is exercised.
        "g1": 1.0 + 0.1 * jax.random.normal(ks[0], (1, input_dim), jnp.float32),
        "b1": 0.1 * jax.random.normal(ks[1], (1, input_dim), jnp.float32),
        "m1": 0.05 * jax.random.normal(ks[2], (1, input_dim), jnp.float32),
        "v1": 1.0 + 0.1 * jax.random.uniform(ks[3], (1, input_dim), jnp.float32),
        # Linear(input_dim, hidden): W stored as (in, out).
        "w1": jax.random.uniform(ks[4], (input_dim, hidden), jnp.float32, -lim1, lim1),
        "bias1": jax.random.uniform(ks[5], (1, hidden), jnp.float32, -lim1, lim1),
        # BatchNorm1d(hidden)
        "g2": 1.0 + 0.1 * jax.random.normal(ks[6], (1, hidden), jnp.float32),
        "b2": 0.1 * jax.random.normal(ks[7], (1, hidden), jnp.float32),
        "m2": jnp.zeros((1, hidden), jnp.float32),
        "v2": jnp.ones((1, hidden), jnp.float32),
        # Linear(hidden, r)
        "w2": jax.random.uniform(jax.random.fold_in(key, 100),
                                 (hidden, r), jnp.float32, -lim2, lim2),
        "bias2": jax.random.uniform(jax.random.fold_in(key, 101),
                                    (1, r), jnp.float32, -lim2, lim2),
    }


def dan_reference(x, p):
    h = jnp.mean(x, axis=1)
    h = (h - p["m1"]) / jnp.sqrt(p["v1"] + EPS) * p["g1"] + p["b1"]
    h = h @ p["w1"] + p["bias1"]
    h = (h - p["m2"]) / jnp.sqrt(p["v2"] + EPS) * p["g2"] + p["b2"]
    return h @ p["w2"] + p["bias2"]


if __name__ == "__main__":
    B, S, INPUT_DIM, HIDDEN, R = 8, 8, 32, 32, 16
    key = jax.random.PRNGKey(0)
    kx, kp = jax.random.split(key)
    x = jax.random.normal(kx, (B, S, INPUT_DIM), jnp.float32)
    params = init_params(kp, INPUT_DIM, HIDDEN, R)

    out = jax.block_until_ready(dan_forward(x, params))

    ref = dan_reference(x, params)
    assert out.shape == (B, R)
    assert jnp.allclose(out, ref, atol=1e-4, rtol=1e-4), "mismatch vs reference"
    print("KERNEL_OK")
</pallas_src>

<mosaic_0001>
module attributes {stable_mosaic.version = 11 : i64} {
  func.func @dan_flat_kernel(%arg0: i32, %arg1: memref<8x256xf32, #tpu.memory_space<vmem>>, %arg2: memref<256x128xf32, #tpu.memory_space<vmem>>, %arg3: memref<1x128xf32, #tpu.memory_space<vmem>>, %arg4: memref<8x128xf32, #tpu.memory_space<vmem>>) attributes {dimension_semantics = [#tpu.dimension_semantics<parallel>], iteration_bounds = array<i64: 1>, scalar_prefetch = 0 : i64, scratch_operands = 0 : i64, tpu.core_type = #tpu.core_type<tc>, window_params = [{transform_indices = @transform_0, window_bounds = array<i64: 8, 256>}, {pipeline_mode = #tpu.pipeline_mode<synchronous>, transform_indices = @transform_1, window_bounds = array<i64: 256, 128>}, {pipeline_mode = #tpu.pipeline_mode<synchronous>, transform_indices = @transform_2, window_bounds = array<i64: 1, 128>}, {transform_indices = @transform_3, window_bounds = array<i64: 8, 128>}]} {
    %c0 = arith.constant 0 : index
    %c0_0 = arith.constant 0 : index
    %0 = vector.load %arg1[%c0, %c0_0] : memref<8x256xf32, #tpu.memory_space<vmem>>, vector<8x256xf32>
    %c0_1 = arith.constant 0 : index
    %c0_2 = arith.constant 0 : index
    %1 = vector.load %arg2[%c0_1, %c0_2] : memref<256x128xf32, #tpu.memory_space<vmem>>, vector<256x128xf32>
    %cst = arith.constant dense<0.000000e+00> : vector<8x128xf32>
    %2 = tpu.matmul %0, %1, %cst {dimension_numbers = #tpu.dot_dimension_numbers<[1], [0], [0], [1], [0, 0, 1, 1], [], []>} : vector<8x256xf32>, vector<256x128xf32>, vector<8x128xf32> -> vector<8x128xf32>
    %c0_3 = arith.constant 0 : index
    %c0_4 = arith.constant 0 : index
    %3 = vector.load %arg3[%c0_3, %c0_4] : memref<1x128xf32, #tpu.memory_space<vmem>>, vector<1x128xf32>
    %4 = vector.broadcast %3 : vector<1x128xf32> to vector<8x128xf32>
    %5 = arith.addf %2, %4 : vector<8x128xf32>
    %c0_5 = arith.constant 0 : index
    %c0_6 = arith.constant 0 : index
    %6 = vector.load %arg4[%c0_5, %c0_6] : memref<8x128xf32, #tpu.memory_space<vmem>>, vector<8x128xf32>
    tpu.vector_store %arg4[%c0_5, %c0_6], %5 {strides = array<i32>} : memref<8x128xf32, #tpu.memory_space<vmem>>, vector<8x128xf32>,
    return
  }
  func.func @transform_0(%arg0: i32) -> (i32, i32) {
    %c0_i32 = arith.constant 0 : i32
    %c0_i32_0 = arith.constant 0 : i32
    return %arg0, %c0_i32 : i32, i32
  }
  func.func @transform_1(%arg0: i32) -> (i32, i32) {
    %c0_i32 = arith.constant 0 : i32
    %c0_i32_0 = arith.constant 0 : i32
    %c0_i32_1 = arith.constant 0 : i32
    return %c0_i32, %c0_i32_0 : i32, i32
  }
  func.func @transform_2(%arg0: i32) -> (i32, i32) {
    %c0_i32 = arith.constant 0 : i32
    %c0_i32_0 = arith.constant 0 : i32
    %c0_i32_1 = arith.constant 0 : i32
    return %c0_i32, %c0_i32_0 : i32, i32
  }
  func.func @transform_3(%arg0: i32) -> (i32, i32) {
    %c0_i32 = arith.constant 0 : i32
    %c0_i32_0 = arith.constant 0 : i32
    return %arg0, %c0_i32 : i32, i32
  }
}

</mosaic_0001>

<llo_original>
// kernel: tpu_custom_call.1
$region0: #{tpu_custom_call.1}
  #allocation0 [shape = 'u32[]', space=smem, size = 0x4, offset = 0x4, fixed_abs, tag = 'smem constant byte address 0x4 - core index']
  #allocation1 [shape = 'u32[144,128]{1,0:T(1,128)}', space=vmem, size = 0x12000, scoped, tag = 'internal scratch']
  %s0 = inlined_call_operand.hbm [shape: f32[8,256], index: 0, kind: input, shape index: {}]
  %s1 = inlined_call_operand.hbm [shape: f32[256,128], index: 1, kind: input, shape index: {}]
  %s2 = inlined_call_operand.vmem [shape: f32[1,128], index: 2, kind: input, shape index: {}]
  %s3 = inlined_call_operand.hbm [shape: f32[8,128], index: 3, kind: output, shape index: {}]
  %s4 = sld [smem:[#allocation0]]
  $region30: #{tpu_custom_call.1} parent=0
    _
  %s6 = ssub.s32 1, %s4
  %s7 = scalar_select 0, %s6, %s4
  $region1: #{tpu_custom_call.1} parent=0
    #allocation2 [shape = 'u8[8192]{0}', space=vmem, size = 0x2000, scoped, tag = 'input window, operand 0, single buffered']
    #allocation3 [shape = 's32[1]{0}', space=sflag, size = 0x4, scoped, tag = 'scoped memory for tpu_custom_call.1']
    #allocation4 [shape = 's32[1]{0}', space=sflag, size = 0x4, scoped, tag = 'scoped memory for tpu_custom_call.1']
    #allocation5 [shape = 'u8[131072]{0}', space=vmem, size = 0x20000, scoped, tag = 'input window, operand 1, single buffered']
    #allocation6 [shape = 's32[1]{0}', space=sflag, size = 0x4, scoped, tag = 'scoped memory for tpu_custom_call.1']
    #allocation7 [shape = 'u8[4096]{0}', space=vmem, size = 0x1000, scoped, tag = 'output window, operand 0, single buffered']
    %8 = vsyncpa [#allocation3], 0
    %9 = vsyncpa [#allocation6], 0
    %10 = vsyncpa [#allocation4], 0
    // Predicated region
    $region2: #{tpu_custom_call.1} parent=1 // pred_check
      _
    $region3: #{tpu_custom_call.1} parent=1 // pred_check_branch
      %12 = sbr.rel (0) target = $region5
    $region4: #{tpu_custom_call.1} parent=1 // pred_region
      %s14 = ssub.s32 256, 256
      %15 = vsyncadd [#allocation3], %s14
      %s17 = sshll.u32 [#allocation2], 4
      %s18 = int_to_ptr.vmem [resolvable:$true] %s17
      %20 = dma.hbm_to_vmem [thread:$0]  %s0, 256, %s18, [#allocation3]
    $region5: #{tpu_custom_call.1} parent=1 // pred_fallthru
      _
    // Predicated region
    $region6: #{tpu_custom_call.1} parent=1 // pred_check
      _
    $region7: #{tpu_custom_call.1} parent=1 // pred_check_branch
      %22 = sbr.rel (0) target = $region9
    $region8: #{tpu_custom_call.1} parent=1 // pred_region
      %s24 = ssub.s32 4096, 4096
      %25 = vsyncadd [#allocation6], %s24
      %s26 = sshll.u32 [#allocation5], 4
      %s27 = int_to_ptr.vmem [resolvable:$true] %s26
      %32 = dma.hbm_to_vmem [thread:$0]  %s1, 4096, %s27, [#allocation6], 128, 128, 8
    $region9: #{tpu_custom_call.1} parent=1 // pred_fallthru
      _
    // Predicated region
    $region10: #{tpu_custom_call.1} parent=1 // pred_check
      _
    $region11: #{tpu_custom_call.1} parent=1 // pred_check_branch
      %34 = sbr.rel (0) target = $region13
    $region12: #{tpu_custom_call.1} parent=1 // pred_region
      _
    $region13: #{tpu_custom_call.1} parent=1 // pred_fallthru
      _
    // Predicated region
    $region14: #{tpu_custom_call.1} parent=1 // pred_check
      _
    $region15: #{tpu_custom_call.1} parent=1 // pred_check_branch
      %36 = sbr.rel (0) target = $region17
    $region16: #{tpu_custom_call.1} parent=1 // pred_region
      %37 = dma.done [#allocation3], 256
    $region17: #{tpu_custom_call.1} parent=1 // pred_fallthru
      _
    // Predicated region
    $region18: #{tpu_custom_call.1} parent=1 // pred_check
      _
    $region19: #{tpu_custom_call.1} parent=1 // pred_check_branch
      %39 = sbr.rel (0) target = $region21
    $region20: #{tpu_custom_call.1} parent=1 // pred_region
      %40 = dma.done [#allocation6], 4096
    $region21: #{tpu_custom_call.1} parent=1 // pred_fallthru
      _
    %v41 = vld [vmem:[#allocation2] sm:$0xff]
    %v42 = vld [vmem:[#allocation2 + $0x8] sm:$0xff]
    %v43 = vld [vmem:[#allocation5] sm:$0xff]
    %v44 = vld [vmem:[#allocation5 + $0x8] sm:$0xff]
    %v45 = vld [vmem:[#allocation5 + $0x10] sm:$0xff]
    %v46 = vld [vmem:[#allocation5 + $0x18] sm:$0xff]
    %v47 = vld [vmem:[#allocation5 + $0x20] sm:$0xff]
    %v48 = vld [vmem:[#allocation5 + $0x28] sm:$0xff]
    %v49 = vld [vmem:[#allocation5 + $0x30] sm:$0xff]
    %v50 = vld [vmem:[#allocation5 + $0x38] sm:$0xff]
    %v51 = vld [vmem:[#allocation5 + $0x40] sm:$0xff]
    %v52 = vld [vmem:[#allocation5 + $0x48] sm:$0xff]
    %v53 = vld [vmem:[#allocation5 + $0x50] sm:$0xff]
    %v54 = vld [vmem:[#allocation5 + $0x58] sm:$0xff]
    %v55 = vld [vmem:[#allocation5 + $0x60] sm:$0xff]
    %v56 = vld [vmem:[#allocation5 + $0x68] sm:$0xff]
    %v57 = vld [vmem:[#allocation5 + $0x70] sm:$0xff]
    %v58 = vld [vmem:[#allocation5 + $0x78] sm:$0xff]
    %v59 = vld [vmem:[#allocation5 + $0x80] sm:$0xff]
    %v60 = vld [vmem:[#allocation5 + $0x88] sm:$0xff]
    %v61 = vld [vmem:[#allocation5 + $0x90] sm:$0xff]
    %v62 = vld [vmem:[#allocation5 + $0x98] sm:$0xff]
    %v63 = vld [vmem:[#allocation5 + $0xa0] sm:$0xff]
    %v64 = vld [vmem:[#allocation5 + $0xa8] sm:$0xff]
    %v65 = vld [vmem:[#allocation5 + $0xb0] sm:$0xff]
    %v66 = vld [vmem:[#allocation5 + $0xb8] sm:$0xff]
    %v67 = vld [vmem:[#allocation5 + $0xc0] sm:$0xff]
    %v68 = vld [vmem:[#allocation5 + $0xc8] sm:$0xff]
    %v69 = vld [vmem:[#allocation5 + $0xd0] sm:$0xff]
    %v70 = vld [vmem:[#allocation5 + $0xd8] sm:$0xff]
    %v71 = vld [vmem:[#allocation5 + $0xe0] sm:$0xff]
    %v72 = vld [vmem:[#allocation5 + $0xe8] sm:$0xff]
    %v73 = vld [vmem:[#allocation5 + $0xf0] sm:$0xff]
    %v74 = vld [vmem:[#allocation5 + $0xf8] sm:$0xff]
    %v75 = vld [vmem:[%s2] sm:$0x1]
    %v77 = vlaneseq
    %v78 = vshrl.u32 %v77, 7
    %v79 = vsub.s32 0, %v78
    %v80 = vrot.slane %v75, %v79
    %82 = vmatprep.subr.mxu0 0.0
    %83 = vmatpush1.msra.mxu0 %v43
    %84 = vmatprep.subr.mxu0 0.0
    %85 = vmatpush1.msra.mxu0 %v44
    %86 = vmatprep.subr.mxu0 0.0
    %87 = vmatpush1.msra.mxu0 %v45
    %88 = vmatprep.subr.mxu0 0.0
    %89 = vmatpush1.msra.mxu0 %v46
    %90 = vmatprep.subr.mxu0 0.0
    %91 = vmatpush1.msra.mxu0 %v47
    %92 = vmatprep.subr.mxu0 0.0
    %93 = vmatpush1.msra.mxu0 %v48
    %94 = vmatprep.subr.mxu0 0.0
    %95 = vmatpush1.msra.mxu0 %v49
    %96 = vmatprep.subr.mxu0 0.0
    %97 = vmatpush1.msra.mxu0 %v50
    %98 = vmatprep.subr.mxu0 0.0
    %99 = vmatpush1.msra.mxu0 %v51
    %100 = vmatprep.subr.mxu0 0.0
    %101 = vmatpush1.msra.mxu0 %v52
    %102 = vmatprep.subr.mxu0 0.0
    %103 = vmatpush1.msra.mxu0 %v53
    %104 = vmatprep.subr.mxu0 0.0
    %105 = vmatpush1.msra.mxu0 %v54
    %106 = vmatprep.subr.mxu0 0.0
    %107 = vmatpush1.msra.mxu0 %v55
    %108 = vmatprep.subr.mxu0 0.0
    %109 = vmatpush1.msra.mxu0 %v56
    %110 = vmatprep.subr.mxu0 0.0
    %111 = vmatpush1.msra.mxu0 %v57
    %112 = vmatprep.subr.mxu0 0.0
    %113 = vmatpush1.msra.mxu0 %v58
    %114 = vmatprep.subr.mxu0 0.0
    %115 = vmatpush1.msra.mxu0 %v59
    %116 = vmatprep.subr.mxu0 0.0
    %117 = vmatpush1.msra.mxu0 %v60
    %118 = vmatprep.subr.mxu0 0.0
    %119 = vmatpush1.msra.mxu0 %v61
    %120 = vmatprep.subr.mxu0 0.0
    %121 = vmatpush1.msra.mxu0 %v62
    %122 = vmatprep.subr.mxu0 0.0
    %123 = vmatpush1.msra.mxu0 %v63
    %124 = vmatprep.subr.mxu0 0.0
    %125 = vmatpush1.msra.mxu0 %v64
    %126 = vmatprep.subr.mxu0 0.0
    %127 = vmatpush1.msra.mxu0 %v65
    %128 = vmatprep.subr.mxu0 0.0
    %129 = vmatpush1.msra.mxu0 %v66
    %130 = vmatprep.subr.mxu0 0.0
    %131 = vmatpush1.msra.mxu0 %v67
    %132 = vmatprep.subr.mxu0 0.0
    %133 = vmatpush1.msra.mxu0 %v68
    %134 = vmatprep.subr.mxu0 0.0
    %135 = vmatpush1.msra.mxu0 %v69
    %136 = vmatprep.subr.mxu0 0.0
    %137 = vmatpush1.msra.mxu0 %v70
    %138 = vmatprep.subr.mxu0 0.0
    %139 = vmatpush1.msra.mxu0 %v71
    %140 = vmatprep.subr.mxu0 0.0
    %141 = vmatpush1.msra.mxu0 %v72
    %142 = vmatprep.subr.mxu0 0.0
    %143 = vmatpush1.msra.mxu0 %v73
    %144 = vmatprep.subr.mxu0 0.0
    %145 = vmatpush1.msra.mxu0 %v74
    %146 = vmatprep.mubr.f32.mxu0 %v42
    %147 = vmatmul.mubr.f32.gmra.mrb[0].mxu0 %v41
    %v148 = vpop.f32.mrb[0].mxu0
    %v149 = vadd.f32 %v80, %v148
    %v150 = vpop.f32.mrb[0].mxu0
    %151 = vdwg.mxu0
    %152 = vst [vmem:[#allocation7] sm:$0xff] %v149
    // Predicated region
    $region22: #{tpu_custom_call.1} parent=1 // pred_check
      _
    $region23: #{tpu_custom_call.1} parent=1 // pred_check_branch
      %154 = sbr.rel (0) target = $region25
    $region24: #{tpu_custom_call.1} parent=1 // pred_region
      %s156 = ssub.s32 128, 128
      %157 = vsyncadd [#allocation4], %s156
      %s159 = sshll.u32 [#allocation7], 4
      %s160 = int_to_ptr.vmem [resolvable:$true] %s159
      %162 = dma.vmem_to_hbm [thread:$0]  %s160, 128, %s3, [#allocation4]
    $region25: #{tpu_custom_call.1} parent=1 // pred_fallthru
      _
    // Predicated region
    $region26: #{tpu_custom_call.1} parent=1 // pred_check
      _
    $region27: #{tpu_custom_call.1} parent=1 // pred_check_branch
      %164 = sbr.rel (0) target = $region29
    $region28: #{tpu_custom_call.1} parent=1 // pred_region
      %165 = dma.done [#allocation4], 128
    $region29: #{tpu_custom_call.1} parent=1 // pred_fallthru
      _
    %166 = vsyncpa [#allocation3], 1
    %167 = vsyncpa [#allocation6], 1
    %168 = vsyncpa [#allocation4], 1

</llo_original>
